<compile_context>
chip_gen: v6e
topology: v6e:2x2x1
jax: 0.10.0
libtpu: 0.0.40
codegen_flags: <defaults>
</compile_context>

<pallas_src>
import functools

import jax
import jax.numpy as jnp
from jax.experimental import pallas as pl
from jax.experimental.pallas import tpu as pltpu

LANE = 128      # TPU lane width (last dim of a vreg)
SUBLANE = 8     # f32 sublane width (second-to-last dim)


def _round_up(x, m):
    return (x + m - 1) // m * m


def _round_down_granule(rows):
    """Round a row count down to an MXU-friendly granule (256 / 128 / 8)."""
    for g in (256, 128, SUBLANE):
        if rows >= g:
            return rows // g * g
    return SUBLANE


@functools.lru_cache(maxsize=None)
def _vmem_capacity_bytes():
    try:
        cap = int(pltpu.get_tpu_info().vmem_capacity_bytes)
        if cap > 0:
            return cap
    except Exception:
        pass
    return 64 * 1024 * 1024   # conservative default: v7x per-TensorCore VMEM


# --------------------------------------------------------------------------
# Kernels
# --------------------------------------------------------------------------
def dae_resident_kernel(x_ref, w_enc_ref, b_enc_ref, w_dec_ref, b_dec_ref, out_ref):
    """Fused encoder -> ReLU -> decoder; full weights VMEM-resident."""
    # Encoder matmul on the MXU, f32 accumulation.
    z = jnp.dot(x_ref[...], w_enc_ref[...], preferred_element_type=jnp.float32)
    # Bias + ReLU epilogue stays in f32 on the VPU.
    z = jnp.maximum(z + b_enc_ref[...].astype(jnp.float32), 0.0)
    # Single cast of z to the decoder-weight dtype (no-op for f32 params;
    # the one bf16 cast when the bf16 compute path is used).
    y = jnp.dot(z.astype(w_dec_ref.dtype), w_dec_ref[...],
                preferred_element_type=jnp.float32)
    out_ref[...] = (y + b_dec_ref[...].astype(jnp.float32)).astype(out_ref.dtype)


def dae_hidden_tiled_kernel(x_ref, w_enc_ref, b_enc_ref, w_dec_ref, b_dec_ref,
                            out_ref, acc_ref):
    """Fallback for weights too large for VMEM: stream H tiles, accumulate y."""
    k = pl.program_id(1)

    @pl.when(k == 0)
    def _():
        acc_ref[...] = jnp.zeros_like(acc_ref)

    # z columns for this H tile (ReLU is elementwise per hidden unit, so it is
    # exact to apply it per tile).
    z = jnp.dot(x_ref[...], w_enc_ref[...], preferred_element_type=jnp.float32)
    z = jnp.maximum(z + b_enc_ref[...].astype(jnp.float32), 0.0)
    acc_ref[...] += jnp.dot(z.astype(w_dec_ref.dtype), w_dec_ref[...],
                            preferred_element_type=jnp.float32)

    @pl.when(k == pl.num_programs(1) - 1)
    def _():
        out_ref[...] = (acc_ref[...]
                        + b_dec_ref[...].astype(jnp.float32)).astype(out_ref.dtype)


# --------------------------------------------------------------------------
# Wrapper
# --------------------------------------------------------------------------
@functools.partial(jax.jit,
                   static_argnames=("block_b", "compute_dtype", "force_hidden_tiling"))
def denoising_autoencoder_forward(x, w_enc, b_enc, w_dec, b_dec, *,
                                  block_b=1024, compute_dtype=None,
                                  force_hidden_tiling=False):
    """Forward pass of the denoising autoencoder.

    x:     (B, D_in)
    w_enc: (D_in, H)  -- stored transposed vs torch: (in_features, out_features)
    b_enc: (1, H)
    w_dec: (H, D_in)
    b_dec: (1, D_in)
    compute_dtype: optional (e.g. jnp.bfloat16) dtype for x / weights on the
        MXU; accumulation and the bias/ReLU epilogue stay in f32.
    """
    B, D_in = x.shape
    H = w_enc.shape[1]
    out_dtype = x.dtype
    cdt = jnp.dtype(compute_dtype) if compute_dtype is not None else jnp.dtype(x.dtype)

    in_itemsize = cdt.itemsize
    out_itemsize = jnp.dtype(out_dtype).itemsize
    bias_itemsize = jnp.dtype(b_enc.dtype).itemsize

    # Lane padding: every feature dim a multiple of 128 -> full MXU tiles and
    # lane-dense (unmasked) output stores. Padded columns are sliced off.
    D_pad = _round_up(D_in, LANE)
    H_pad = _round_up(H, LANE)

    capacity = _vmem_capacity_bytes()
    vmem_budget = capacity * 3 // 4      # ~96 MiB on v5e/v6e, ~48 MiB on v7x

    # Resident-weight footprint -- single-buffered (pl.Buffered(1) below).
    weight_bytes = 2 * D_pad * H_pad * in_itemsize + (H_pad + D_pad) * bias_itemsize
    # VMEM per batch row: double-buffered x / out tiles + f32 z and y intermediates.
    per_row = (2 * D_pad * in_itemsize + 2 * D_pad * out_itemsize
               + 4 * H_pad + 4 * D_pad)

    min_rows = min(128, _round_up(B, SUBLANE))
    resident_fits = weight_bytes + per_row * min_rows <= vmem_budget

    if resident_fits and not force_hidden_tiling:
        # ---------------- Path A: weights fully VMEM-resident ----------------
        avail = vmem_budget - weight_bytes
        max_rows = _round_down_granule(avail // per_row)
        B_tile = int(min(block_b, _round_up(B, SUBLANE), max_rows))
        B_tile = max(SUBLANE, B_tile // SUBLANE * SUBLANE)
        B_pad = _round_up(B, B_tile)

        x_p = jnp.pad(x, ((0, B_pad - B), (0, D_pad - D_in))).astype(cdt)
        w_enc_p = jnp.pad(w_enc, ((0, D_pad - D_in), (0, H_pad - H))).astype(cdt)
        b_enc_p = jnp.pad(b_enc, ((0, 0), (0, H_pad - H)))
        w_dec_p = jnp.pad(w_dec, ((0, H_pad - H), (0, D_pad - D_in))).astype(cdt)
        b_dec_p = jnp.pad(b_dec, ((0, 0), (0, D_pad - D_in)))

        footprint = (weight_bytes
                     + 2 * B_tile * D_pad * (in_itemsize + out_itemsize)
                     + B_tile * (H_pad + D_pad) * 4)
        vmem_limit = int(min(capacity, max(16 << 20, footprint * 5 // 4 + (4 << 20))))

        flops = 4 * B_pad * D_pad * H_pad            # 2 matmuls * 2 flops/MAC
        bytes_accessed = (B_pad * D_pad * (in_itemsize + out_itemsize)
                          + 2 * D_pad * H_pad * in_itemsize
                          + (H_pad + D_pad) * bias_itemsize)

        resident = pl.Buffered(1)    # constant index_map -> 2nd buffer is pure waste
        out_p = pl.pallas_call(
            dae_resident_kernel,
            out_shape=jax.ShapeDtypeStruct((B_pad, D_pad), out_dtype),
            grid=(B_pad // B_tile,),
            in_specs=[
                pl.BlockSpec((B_tile, D_pad), lambda i: (i, 0)),      # batch-tiled x
                pl.BlockSpec((D_pad, H_pad), lambda i: (0, 0), pipeline_mode=resident),
                pl.BlockSpec((1, H_pad), lambda i: (0, 0), pipeline_mode=resident),
                pl.BlockSpec((H_pad, D_pad), lambda i: (0, 0), pipeline_mode=resident),
                pl.BlockSpec((1, D_pad), lambda i: (0, 0), pipeline_mode=resident),
            ],
            out_specs=pl.BlockSpec((B_tile, D_pad), lambda i: (i, 0)),
            compiler_params=pltpu.CompilerParams(
                dimension_semantics=("parallel",),    # shard batch tiles across TCs
                vmem_limit_bytes=vmem_limit),
            cost_estimate=pl.CostEstimate(flops=int(flops), transcendentals=0,
                                          bytes_accessed=int(bytes_accessed)),
        )(x_p, w_enc_p, b_enc_p, w_dec_p, b_dec_p)
        return out_p[:B, :D_in]

    # ------------- Path B: hidden-dim tiled (weights streamed) --------------
    bt_limit = max(SUBLANE, min(block_b, _round_up(B, SUBLANE)))
    B_tile, H_tile = SUBLANE, LANE
    for bt in ([c for c in (1024, 512, 256, 128, 64, 32, 16, 8) if c <= bt_limit]
               or [SUBLANE]):
        fixed = (2 * bt * D_pad * (in_itemsize + out_itemsize)   # x / out (2-buffered)
                 + bt * D_pad * 4                                # f32 accumulator
                 + D_pad * bias_itemsize)                        # resident b_dec
        per_col = (4 * D_pad * in_itemsize                       # w_enc+w_dec (2-buffered)
                   + 2 * bias_itemsize + 4 * bt)                 # b_enc + f32 z column
        cols = (vmem_budget - fixed) // per_col
        ht = min(H_pad, cols // LANE * LANE)
        if ht >= LANE:
            B_tile, H_tile = int(bt), int(ht)
            break
    B_pad = _round_up(B, B_tile)
    H_pad2 = _round_up(H_pad, H_tile)

    x_p = jnp.pad(x, ((0, B_pad - B), (0, D_pad - D_in))).astype(cdt)
    w_enc_p = jnp.pad(w_enc, ((0, D_pad - D_in), (0, H_pad2 - H))).astype(cdt)
    b_enc_p = jnp.pad(b_enc, ((0, 0), (0, H_pad2 - H)))
    w_dec_p = jnp.pad(w_dec, ((0, H_pad2 - H), (0, D_pad - D_in))).astype(cdt)
    b_dec_p = jnp.pad(b_dec, ((0, 0), (0, D_pad - D_in)))

    footprint = (2 * B_tile * D_pad * (in_itemsize + out_itemsize)
                 + 4 * D_pad * H_tile * in_itemsize
                 + 2 * H_tile * bias_itemsize + D_pad * bias_itemsize
                 + B_tile * D_pad * 4 + B_tile * H_tile * 4)
    vmem_limit = int(min(capacity, max(16 << 20, footprint * 5 // 4 + (4 << 20))))

    flops = 4 * B_pad * D_pad * H_pad2
    bytes_accessed = ((B_pad // B_tile) * 2 * D_pad * H_pad2 * in_itemsize
                      + B_pad * D_pad * (in_itemsize + out_itemsize)
                      + (H_pad2 + D_pad) * bias_itemsize)

    out_p = pl.pallas_call(
        dae_hidden_tiled_kernel,
        out_shape=jax.ShapeDtypeStruct((B_pad, D_pad), out_dtype),
        grid=(B_pad // B_tile, H_pad2 // H_tile),
        in_specs=[
            pl.BlockSpec((B_tile, D_pad), lambda i, k: (i, 0)),
            pl.BlockSpec((D_pad, H_tile), lambda i, k: (0, k)),
            pl.BlockSpec((1, H_tile), lambda i, k: (0, k)),
            pl.BlockSpec((H_tile, D_pad), lambda i, k: (k, 0)),
            pl.BlockSpec((1, D_pad), lambda i, k: (0, 0), pipeline_mode=pl.Buffered(1)),
        ],
        out_specs=pl.BlockSpec((B_tile, D_pad), lambda i, k: (i, 0)),
        scratch_shapes=[pltpu.VMEM((B_tile, D_pad), jnp.float32)],
        compiler_params=pltpu.CompilerParams(
            dimension_semantics=("parallel", "arbitrary"),   # H axis is a reduction
            vmem_limit_bytes=vmem_limit),
        cost_estimate=pl.CostEstimate(flops=int(flops), transcendentals=0,
                                      bytes_accessed=int(bytes_accessed)),
    )(x_p, w_enc_p, b_enc_p, w_dec_p, b_dec_p)
    return out_p[:B, :D_in]


# --------------------------------------------------------------------------
# Params / reference
# --------------------------------------------------------------------------
def init_params(key, input_dim, hidden_dim, dtype=jnp.float32):
    """Deterministic init mimicking nn.Linear's uniform(-1/sqrt(fan_in), 1/sqrt(fan_in))."""
    k1, k2, k3, k4 = jax.random.split(key, 4)
    bound_enc = 1.0 / (input_dim ** 0.5)
    bound_dec = 1.0 / (hidden_dim ** 0.5)
    # Stored already transposed: (in_features, out_features).
    w_enc = jax.random.uniform(k1, (input_dim, hidden_dim), dtype,
                               minval=-bound_enc, maxval=bound_enc)
    b_enc = jax.random.uniform(k2, (1, hidden_dim), dtype,
                               minval=-bound_enc, maxval=bound_enc)
    w_dec = jax.random.uniform(k3, (hidden_dim, input_dim), dtype,
                               minval=-bound_dec, maxval=bound_dec)
    b_dec = jax.random.uniform(k4, (1, input_dim), dtype,
                               minval=-bound_dec, maxval=bound_dec)
    return w_enc, b_enc, w_dec, b_dec


def reference_forward(x, w_enc, b_enc, w_dec, b_dec):
    z = jnp.maximum(x @ w_enc + b_enc, 0.0)
    return z @ w_dec + b_dec


if __name__ == "__main__":
    batch, input_dim, hidden_dim = 16, 64, 32

    key = jax.random.PRNGKey(0)
    kx, kp = jax.random.split(key)
    x = jax.random.normal(kx, (batch, input_dim), jnp.float32)
    w_enc, b_enc, w_dec, b_dec = init_params(kp, input_dim, hidden_dim)

    ref = reference_forward(x, w_enc, b_enc, w_dec, b_dec)

    # 1) f32, fully VMEM-resident weights (default fast path).
    out = jax.block_until_ready(
        denoising_autoencoder_forward(x, w_enc, b_enc, w_dec, b_dec))
    assert out.shape == (batch, input_dim), out.shape
    assert jnp.allclose(out, ref, atol=1e-5, rtol=1e-5), "resident path mismatch"

    # 2) f32, hidden-dim-tiled fallback (forced; the path used when D*H weights
    #    do not fit in VMEM).
    out_tiled = jax.block_until_ready(
        denoising_autoencoder_forward(x, w_enc, b_enc, w_dec, b_dec,
                                      force_hidden_tiling=True))
    assert jnp.allclose(out_tiled, ref, atol=1e-5, rtol=1e-5), "tiled path mismatch"

    # 3) bf16 weight/activation path (f32 accumulation + f32 epilogue).
    out_bf16 = jax.block_until_ready(
        denoising_autoencoder_forward(x, w_enc, b_enc, w_dec, b_dec,
                                      compute_dtype=jnp.bfloat16))
    assert jnp.allclose(out_bf16, ref, atol=5e-2, rtol=5e-2), "bf16 path mismatch"

    print("KERNEL_OK")
</pallas_src>

<mosaic_0001>
module attributes {stable_mosaic.version = 11 : i64} {
  func.func @dae_resident_kernel(%arg0: i32, %arg1: memref<16x128xf32, #tpu.memory_space<vmem>>, %arg2: memref<128x128xf32, #tpu.memory_space<vmem>>, %arg3: memref<1x128xf32, #tpu.memory_space<vmem>>, %arg4: memref<128x128xf32, #tpu.memory_space<vmem>>, %arg5: memref<1x128xf32, #tpu.memory_space<vmem>>, %arg6: memref<16x128xf32, #tpu.memory_space<vmem>>) attributes {dimension_semantics = [#tpu.dimension_semantics<parallel>], iteration_bounds = array<i64: 1>, scalar_prefetch = 0 : i64, scratch_operands = 0 : i64, tpu.core_type = #tpu.core_type<tc>, window_params = [{transform_indices = @transform_0, window_bounds = array<i64: 16, 128>}, {pipeline_mode = #tpu.pipeline_mode<synchronous>, transform_indices = @transform_1, window_bounds = array<i64: 128, 128>}, {pipeline_mode = #tpu.pipeline_mode<synchronous>, transform_indices = @transform_2, window_bounds = array<i64: 1, 128>}, {pipeline_mode = #tpu.pipeline_mode<synchronous>, transform_indices = @transform_3, window_bounds = array<i64: 128, 128>}, {pipeline_mode = #tpu.pipeline_mode<synchronous>, transform_indices = @transform_4, window_bounds = array<i64: 1, 128>}, {transform_indices = @transform_5, window_bounds = array<i64: 16, 128>}]} {
    %c0 = arith.constant 0 : index
    %c0_0 = arith.constant 0 : index
    %0 = vector.load %arg1[%c0, %c0_0] : memref<16x128xf32, #tpu.memory_space<vmem>>, vector<16x128xf32>
    %c0_1 = arith.constant 0 : index
    %c0_2 = arith.constant 0 : index
    %1 = vector.load %arg2[%c0_1, %c0_2] : memref<128x128xf32, #tpu.memory_space<vmem>>, vector<128x128xf32>
    %cst = arith.constant dense<0.000000e+00> : vector<16x128xf32>
    %2 = tpu.matmul %0, %1, %cst {dimension_numbers = #tpu.dot_dimension_numbers<[1], [0], [0], [1], [0, 0, 1, 1], [], []>} : vector<16x128xf32>, vector<128x128xf32>, vector<16x128xf32> -> vector<16x128xf32>
    %c0_3 = arith.constant 0 : index
    %c0_4 = arith.constant 0 : index
    %3 = vector.load %arg3[%c0_3, %c0_4] : memref<1x128xf32, #tpu.memory_space<vmem>>, vector<1x128xf32>
    %4 = vector.broadcast %3 : vector<1x128xf32> to vector<16x128xf32>
    %5 = arith.addf %2, %4 : vector<16x128xf32>
    %cst_5 = arith.constant 0.000000e+00 : f32
    %6 = vector.broadcast %cst_5 : f32 to vector<16x128xf32>
    %7 = arith.maximumf %5, %6 : vector<16x128xf32>
    %c0_6 = arith.constant 0 : index
    %c0_7 = arith.constant 0 : index
    %8 = vector.load %arg4[%c0_6, %c0_7] : memref<128x128xf32, #tpu.memory_space<vmem>>, vector<128x128xf32>
    %cst_8 = arith.constant dense<0.000000e+00> : vector<16x128xf32>
    %9 = tpu.matmul %7, %8, %cst_8 {dimension_numbers = #tpu.dot_dimension_numbers<[1], [0], [0], [1], [0, 0, 1, 1], [], []>} : vector<16x128xf32>, vector<128x128xf32>, vector<16x128xf32> -> vector<16x128xf32>
    %c0_9 = arith.constant 0 : index
    %c0_10 = arith.constant 0 : index
    %10 = vector.load %arg5[%c0_9, %c0_10] : memref<1x128xf32, #tpu.memory_space<vmem>>, vector<1x128xf32>
    %11 = vector.broadcast %10 : vector<1x128xf32> to vector<16x128xf32>
    %12 = arith.addf %9, %11 : vector<16x128xf32>
    %c0_11 = arith.constant 0 : index
    %c0_12 = arith.constant 0 : index
    %13 = vector.load %arg6[%c0_11, %c0_12] : memref<16x128xf32, #tpu.memory_space<vmem>>, vector<16x128xf32>
    tpu.vector_store %arg6[%c0_11, %c0_12], %12 {strides = array<i32>} : memref<16x128xf32, #tpu.memory_space<vmem>>, vector<16x128xf32>,
    return
  }
  func.func @transform_0(%arg0: i32) -> (i32, i32) {
    %c0_i32 = arith.constant 0 : i32
    %c0_i32_0 = arith.constant 0 : i32
    return %arg0, %c0_i32 : i32, i32
  }
  func.func @transform_1(%arg0: i32) -> (i32, i32) {
    %c0_i32 = arith.constant 0 : i32
    %c0_i32_0 = arith.constant 0 : i32
    %c0_i32_1 = arith.constant 0 : i32
    return %c0_i32, %c0_i32_0 : i32, i32
  }
  func.func @transform_2(%arg0: i32) -> (i32, i32) {
    %c0_i32 = arith.constant 0 : i32
    %c0_i32_0 = arith.constant 0 : i32
    %c0_i32_1 = arith.constant 0 : i32
    return %c0_i32, %c0_i32_0 : i32, i32
  }
  func.func @transform_3(%arg0: i32) -> (i32, i32) {
    %c0_i32 = arith.constant 0 : i32
    %c0_i32_0 = arith.constant 0 : i32
    %c0_i32_1 = arith.constant 0 : i32
    return %c0_i32, %c0_i32_0 : i32, i32
  }
  func.func @transform_4(%arg0: i32) -> (i32, i32) {
    %c0_i32 = arith.constant 0 : i32
    %c0_i32_0 = arith.constant 0 : i32
    %c0_i32_1 = arith.constant 0 : i32
    return %c0_i32, %c0_i32_0 : i32, i32
  }
  func.func @transform_5(%arg0: i32) -> (i32, i32) {
    %c0_i32 = arith.constant 0 : i32
    %c0_i32_0 = arith.constant 0 : i32
    return %arg0, %c0_i32 : i32, i32
  }
}

</mosaic_0001>

<llo_original>
// kernel: denoising_autoencoder_forward.1
$region0: #{denoising_autoencoder_forward.1}
  #allocation0 [shape = 'u32[]', space=smem, size = 0x4, offset = 0x4, fixed_abs, tag = 'smem constant byte address 0x4 - core index']
  #allocation1 [shape = 'u32[144,128]{1,0:T(1,128)}', space=vmem, size = 0x12000, scoped, tag = 'internal scratch']
  %s0 = inlined_call_operand.vmem [shape: f32[16,128], index: 0, kind: input, shape index: {}]
  %s1 = inlined_call_operand.vmem [shape: f32[128,128], index: 1, kind: input, shape index: {}]
  %s2 = inlined_call_operand.vmem [shape: f32[1,128], index: 2, kind: input, shape index: {}]
  %s3 = inlined_call_operand.vmem [shape: f32[128,128], index: 3, kind: input, shape index: {}]
  %s4 = inlined_call_operand.vmem [shape: f32[1,128], index: 4, kind: input, shape index: {}]
  %s5 = inlined_call_operand.hbm [shape: f32[16,128], index: 5, kind: output, shape index: {}]
  %s6 = sld [smem:[#allocation0]]
  $region30: #{denoising_autoencoder_forward.1} parent=0
    _
  %s8 = ssub.s32 1, %s6
  %s9 = scalar_select 0, %s8, %s6
  $region1: #{denoising_autoencoder_forward.1} parent=0
    #allocation2 [shape = 'u8[8192]{0}', space=vmem, size = 0x2000, scoped, tag = 'output window, operand 0, single buffered']
    #allocation3 [shape = 's32[1]{0}', space=sflag, size = 0x4, scoped, tag = 'scoped memory for denoising_autoencoder_forward.1']
    %10 = vsyncpa [#allocation3], 0
    // Predicated region
    $region2: #{denoising_autoencoder_forward.1} parent=1 // pred_check
      _
    $region3: #{denoising_autoencoder_forward.1} parent=1 // pred_check_branch
      %12 = sbr.rel (0) target = $region5
    $region4: #{denoising_autoencoder_forward.1} parent=1 // pred_region
      _
    $region5: #{denoising_autoencoder_forward.1} parent=1 // pred_fallthru
      _
    // Predicated region
    $region6: #{denoising_autoencoder_forward.1} parent=1 // pred_check
      _
    $region7: #{denoising_autoencoder_forward.1} parent=1 // pred_check_branch
      %14 = sbr.rel (0) target = $region9
    $region8: #{denoising_autoencoder_forward.1} parent=1 // pred_region
      _
    $region9: #{denoising_autoencoder_forward.1} parent=1 // pred_fallthru
      _
    // Predicated region
    $region10: #{denoising_autoencoder_forward.1} parent=1 // pred_check
      _
    $region11: #{denoising_autoencoder_forward.1} parent=1 // pred_check_branch
      %16 = sbr.rel (0) target = $region13
    $region12: #{denoising_autoencoder_forward.1} parent=1 // pred_region
      _
    $region13: #{denoising_autoencoder_forward.1} parent=1 // pred_fallthru
      _
    // Predicated region
    $region14: #{denoising_autoencoder_forward.1} parent=1 // pred_check
      _
    $region15: #{denoising_autoencoder_forward.1} parent=1 // pred_check_branch
      %18 = sbr.rel (0) target = $region17
    $region16: #{denoising_autoencoder_forward.1} parent=1 // pred_region
      _
    $region17: #{denoising_autoencoder_forward.1} parent=1 // pred_fallthru
      _
    // Predicated region
    $region18: #{denoising_autoencoder_forward.1} parent=1 // pred_check
      _
    $region19: #{denoising_autoencoder_forward.1} parent=1 // pred_check_branch
      %20 = sbr.rel (0) target = $region21
    $region20: #{denoising_autoencoder_forward.1} parent=1 // pred_region
      _
    $region21: #{denoising_autoencoder_forward.1} parent=1 // pred_fallthru
      _
    %v21 = vld [vmem:[%s0] sm:$0xff]
    %v22 = vld [vmem:[%s0 + $0x8] sm:$0xff]
    %v23 = vld [vmem:[%s1] sm:$0xff]
    %v24 = vld [vmem:[%s1 + $0x8] sm:$0xff]
    %v25 = vld [vmem:[%s1 + $0x10] sm:$0xff]
    %v26 = vld [vmem:[%s1 + $0x18] sm:$0xff]
    %v27 = vld [vmem:[%s1 + $0x20] sm:$0xff]
    %v28 = vld [vmem:[%s1 + $0x28] sm:$0xff]
    %v29 = vld [vmem:[%s1 + $0x30] sm:$0xff]
    %v30 = vld [vmem:[%s1 + $0x38] sm:$0xff]
    %v31 = vld [vmem:[%s1 + $0x40] sm:$0xff]
    %v32 = vld [vmem:[%s1 + $0x48] sm:$0xff]
    %v33 = vld [vmem:[%s1 + $0x50] sm:$0xff]
    %v34 = vld [vmem:[%s1 + $0x58] sm:$0xff]
    %v35 = vld [vmem:[%s1 + $0x60] sm:$0xff]
    %v36 = vld [vmem:[%s1 + $0x68] sm:$0xff]
    %v37 = vld [vmem:[%s1 + $0x70] sm:$0xff]
    %v38 = vld [vmem:[%s1 + $0x78] sm:$0xff]
    %v39 = vld [vmem:[%s2] sm:$0x1]
    %v41 = vlaneseq
    %v42 = vshrl.u32 %v41, 7
    %v43 = vsub.s32 0, %v42
    %v44 = vrot.slane %v39, %v43
    %46 = vmatprep.subr.mxu0 0.0
    %47 = vmatpush1.msra.mxu0 %v38
    %48 = vmatprep.subr.mxu0 0.0
    %49 = vmatpush1.msra.mxu0 %v37
    %50 = vmatprep.subr.mxu0 0.0
    %51 = vmatpush1.msra.mxu0 %v36
    %52 = vmatprep.subr.mxu0 0.0
    %53 = vmatpush1.msra.mxu0 %v35
    %54 = vmatprep.subr.mxu0 0.0
    %55 = vmatpush1.msra.mxu0 %v34
    %56 = vmatprep.subr.mxu0 0.0
    %57 = vmatpush1.msra.mxu0 %v33
    %58 = vmatprep.subr.mxu0 0.0
    %59 = vmatpush1.msra.mxu0 %v32
    %60 = vmatprep.subr.mxu0 0.0
    %61 = vmatpush1.msra.mxu0 %v31
    %62 = vmatprep.subr.mxu0 0.0
    %63 = vmatpush1.msra.mxu0 %v30
    %64 = vmatprep.subr.mxu0 0.0
    %65 = vmatpush1.msra.mxu0 %v29
    %66 = vmatprep.subr.mxu0 0.0
    %67 = vmatpush1.msra.mxu0 %v28
    %68 = vmatprep.subr.mxu0 0.0
    %69 = vmatpush1.msra.mxu0 %v27
    %70 = vmatprep.subr.mxu0 0.0
    %71 = vmatpush1.msra.mxu0 %v26
    %72 = vmatprep.subr.mxu0 0.0
    %73 = vmatpush1.msra.mxu0 %v25
    %74 = vmatprep.subr.mxu0 0.0
    %75 = vmatpush1.msra.mxu0 %v24
    %76 = vmatprep.subr.mxu0 0.0
    %77 = vmatpush1.msra.mxu0 %v23
    %78 = vmatprep.subr.mxu0 0.0
    %79 = vmatpush2.msra.mxu0 0.0
    %80 = vmatprep.subr.mxu0 0.0
    %81 = vmatpush2.msra.mxu0 0.0
    %82 = vmatprep.subr.mxu0 0.0
    %83 = vmatpush2.msra.mxu0 0.0
    %84 = vmatprep.subr.mxu0 0.0
    %85 = vmatpush2.msra.mxu0 0.0
    %86 = vmatprep.subr.mxu0 0.0
    %87 = vmatpush2.msra.mxu0 0.0
    %88 = vmatprep.subr.mxu0 0.0
    %89 = vmatpush2.msra.mxu0 0.0
    %90 = vmatprep.subr.mxu0 0.0
    %91 = vmatpush2.msra.mxu0 0.0
    %92 = vmatprep.subr.mxu0 0.0
    %93 = vmatpush2.msra.mxu0 0.0
    %94 = vmatprep.subr.mxu0 0.0
    %95 = vmatpush2.msra.mxu0 0.0
    %96 = vmatprep.subr.mxu0 0.0
    %97 = vmatpush2.msra.mxu0 0.0
    %98 = vmatprep.subr.mxu0 0.0
    %99 = vmatpush2.msra.mxu0 0.0
    %100 = vmatprep.subr.mxu0 0.0
    %101 = vmatpush2.msra.mxu0 0.0
    %102 = vmatprep.subr.mxu0 0.0
    %103 = vmatpush2.msra.mxu0 0.0
    %104 = vmatprep.subr.mxu0 0.0
    %105 = vmatpush2.msra.mxu0 0.0
    %106 = vmatprep.subr.mxu0 0.0
    %107 = vmatpush2.msra.mxu0 0.0
    %108 = vmatprep.subr.mxu0 0.0
    %109 = vmatpush2.msra.mxu0 0.0
    %110 = vmatprep.mubr.f32.mxu0 0.0
    %111 = vmatmul.mubr.f32.gmra.mxu0 %v21
    %v112 = vpop.f32.mrf.mxu0
    %v113 = vadd.f32 %v44, %v112
    %v114 = vpop.f32.mrf.mxu0
    %115 = vmatprep.mubr.f32.mxu0 0.0
    %116 = vmatmul.mubr.f32.gmra.mxu0 %v22
    %v117 = vpop.f32.mrf.mxu0
    %v118 = vadd.f32 %v44, %v117
    %v119 = vpop.f32.mrf.mxu0
    %120 = vdwg.mxu0
    %v121 = vmax.f32 %v113, 0.0
    %v122 = vmax.f32 %v118, 0.0
    %v123 = vld [vmem:[%s3] sm:$0xff]
    %v124 = vld [vmem:[%s3 + $0x8] sm:$0xff]
    %v125 = vld [vmem:[%s3 + $0x10] sm:$0xff]
    %v126 = vld [vmem:[%s3 + $0x18] sm:$0xff]
    %v127 = vld [vmem:[%s3 + $0x20] sm:$0xff]
    %v128 = vld [vmem:[%s3 + $0x28] sm:$0xff]
    %v129 = vld [vmem:[%s3 + $0x30] sm:$0xff]
    %v130 = vld [vmem:[%s3 + $0x38] sm:$0xff]
    %v131 = vld [vmem:[%s3 + $0x40] sm:$0xff]
    %v132 = vld [vmem:[%s3 + $0x48] sm:$0xff]
    %v133 = vld [vmem:[%s3 + $0x50] sm:$0xff]
    %v134 = vld [vmem:[%s3 + $0x58] sm:$0xff]
    %v135 = vld [vmem:[%s3 + $0x60] sm:$0xff]
    %v136 = vld [vmem:[%s3 + $0x68] sm:$0xff]
    %v137 = vld [vmem:[%s3 + $0x70] sm:$0xff]
    %v138 = vld [vmem:[%s3 + $0x78] sm:$0xff]
    %v139 = vld [vmem:[%s4] sm:$0x1]
    %v141 = vlaneseq
    %v142 = vshrl.u32 %v141, 7
    %v143 = vsub.s32 0, %v142
    %v144 = vrot.slane %v139, %v143
    %146 = vmatprep.subr.mxu0 0.0
    %147 = vmatpush1.msra.mxu0 %v138
    %148 = vmatprep.subr.mxu0 0.0
    %149 = vmatpush1.msra.mxu0 %v137
    %150 = vmatprep.subr.mxu0 0.0
    %151 = vmatpush1.msra.mxu0 %v136
    %152 = vmatprep.subr.mxu0 0.0
    %153 = vmatpush1.msra.mxu0 %v135
    %154 = vmatprep.subr.mxu0 0.0
    %155 = vmatpush1.msra.mxu0 %v134
    %156 = vmatprep.subr.mxu0 0.0
    %157 = vmatpush1.msra.mxu0 %v133
    %158 = vmatprep.subr.mxu0 0.0
    %159 = vmatpush1.msra.mxu0 %v132
    %160 = vmatprep.subr.mxu0 0.0
    %161 = vmatpush1.msra.mxu0 %v131
    %162 = vmatprep.subr.mxu0 0.0
    %163 = vmatpush1.msra.mxu0 %v130
    %164 = vmatprep.subr.mxu0 0.0
    %165 = vmatpush1.msra.mxu0 %v129
    %166 = vmatprep.subr.mxu0 0.0
    %167 = vmatpush1.msra.mxu0 %v128
    %168 = vmatprep.subr.mxu0 0.0
    %169 = vmatpush1.msra.mxu0 %v127
    %170 = vmatprep.subr.mxu0 0.0
    %171 = vmatpush1.msra.mxu0 %v126
    %172 = vmatprep.subr.mxu0 0.0
    %173 = vmatpush1.msra.mxu0 %v125
    %174 = vmatprep.subr.mxu0 0.0
    %175 = vmatpush1.msra.mxu0 %v124
    %176 = vmatprep.subr.mxu0 0.0
    %177 = vmatpush1.msra.mxu0 %v123
    %178 = vmatprep.subr.mxu0 0.0
    %179 = vmatpush2.msra.mxu0 0.0
    %180 = vmatprep.subr.mxu0 0.0
    %181 = vmatpush2.msra.mxu0 0.0
    %182 = vmatprep.subr.mxu0 0.0
    %183 = vmatpush2.msra.mxu0 0.0
    %184 = vmatprep.subr.mxu0 0.0
    %185 = vmatpush2.msra.mxu0 0.0
    %186 = vmatprep.subr.mxu0 0.0
    %187 = vmatpush2.msra.mxu0 0.0
    %188 = vmatprep.subr.mxu0 0.0
    %189 = vmatpush2.msra.mxu0 0.0
    %190 = vmatprep.subr.mxu0 0.0
    %191 = vmatpush2.msra.mxu0 0.0
    %192 = vmatprep.subr.mxu0 0.0
    %193 = vmatpush2.msra.mxu0 0.0
    %194 = vmatprep.subr.mxu0 0.0
    %195 = vmatpush2.msra.mxu0 0.0
    %196 = vmatprep.subr.mxu0 0.0
    %197 = vmatpush2.msra.mxu0 0.0
    %198 = vmatprep.subr.mxu0 0.0
    %199 = vmatpush2.msra.mxu0 0.0
    %200 = vmatprep.subr.mxu0 0.0
    %201 = vmatpush2.msra.mxu0 0.0
    %202 = vmatprep.subr.mxu0 0.0
    %203 = vmatpush2.msra.mxu0 0.0
    %204 = vmatprep.subr.mxu0 0.0
    %205 = vmatpush2.msra.mxu0 0.0
    %206 = vmatprep.subr.mxu0 0.0
    %207 = vmatpush2.msra.mxu0 0.0
    %208 = vmatprep.subr.mxu0 0.0
    %209 = vmatpush2.msra.mxu0 0.0
    %210 = vmatprep.mubr.f32.mxu0 0.0
    %211 = vmatmul.mubr.f32.gmra.mxu0 %v121
    %v212 = vpop.f32.mrf.mxu0
    %v213 = vadd.f32 %v144, %v212
    %v214 = vpop.f32.mrf.mxu0
    %215 = vmatprep.mubr.f32.mxu0 0.0
    %216 = vmatmul.mubr.f32.gmra.mxu0 %v122
    %v217 = vpop.f32.mrf.mxu0
    %v218 = vadd.f32 %v144, %v217
    %v219 = vpop.f32.mrf.mxu0
    %220 = vdwg.mxu0
    %221 = vst [vmem:[#allocation2] sm:$0xff] %v213
    %222 = vst [vmem:[#allocation2 + $0x8] sm:$0xff] %v218
    // Predicated region
    $region22: #{denoising_autoencoder_forward.1} parent=1 // pred_check
      _
    $region23: #{denoising_autoencoder_forward.1} parent=1 // pred_check_branch
      %224 = sbr.rel (0) target = $region25
    $region24: #{denoising_autoencoder_forward.1} parent=1 // pred_region
      %s226 = ssub.s32 256, 256
      %227 = vsyncadd [#allocation3], %s226
      %s228 = sshll.u32 [#allocation2], 4
      %s229 = int_to_ptr.vmem [resolvable:$true] %s228
      %234 = dma.vmem_to_hbm [thread:$0]  %s229, 256, %s5, [#allocation3], 128, 128, 8
    $region25: #{denoising_autoencoder_forward.1} parent=1 // pred_fallthru
      _
    // Predicated region
    $region26: #{denoising_autoencoder_forward.1} parent=1 // pred_check
      _
    $region27: #{denoising_autoencoder_forward.1} parent=1 // pred_check_branch
      %236 = sbr.rel (0) target = $region29
    $region28: #{denoising_autoencoder_forward.1} parent=1 // pred_region
      %237 = dma.done [#allocation3], 256
    $region29: #{denoising_autoencoder_forward.1} parent=1 // pred_fallthru
      _
    %238 = vsyncpa [#allocation3], 1

</llo_original>
